<compile_context>
chip_gen: v6e
topology: v6e:2x2x1
jax: 0.10.0
libtpu: 0.0.40
codegen_flags: <defaults>
</compile_context>

<pallas_src>
import functools

import jax
import jax.numpy as jnp
from jax import lax
from jax.experimental import pallas as pl
from jax.experimental.pallas import tpu as pltpu

# Class weights from the module's __init__ (Python scalars -> no captured consts).
W0, W1, W2 = 0.4932, 1.0531, 43.312

LANE_TILE = 512      # pixel columns per grid step (multiple of 128, ~roofline per measurements)
NEG_FILL = -1e30     # padding for unused sublane rows / lanes of the gathered-positive block


def _loss_kernel(x_ref, t_ref, px_ref, pgt_ref, pval_ref, loss_ref, *, hw, lt):
    j = pl.program_id(0)

    # ---------- weighted CE on the gathered positives: once, at grid step 0 ----------
    @pl.when(j == 0)
    def _():
        px = px_ref[...]                                   # (8, BKP): rows 0..C-1 = logits, rest -1e30
        gt = pgt_ref[...]                                  # (1, BKP): target[b, cat, ind]
        valid = pval_ref[...]                              # (1, BKP): 1.0 for real positives
        y = gt.astype(jnp.int32)                           # trunc toward zero, like torch .long()
        row = lax.broadcasted_iota(jnp.int32, px.shape, 0)

        m = jnp.max(px, axis=0, keepdims=True)             # (1, BKP)
        lse = jnp.log(jnp.sum(jnp.exp(px - m), axis=0, keepdims=True)) + m
        x_y = jnp.sum(jnp.where(row == y, px, 0.0), axis=0, keepdims=True)
        w_y = jnp.where(y == 0, W0, jnp.where(y == 1, W1, W2)).astype(jnp.float32)

        num = jnp.sum(valid * w_y * (lse - x_y))
        den = jnp.sum(valid * w_y)
        loss_ref[0, 0] = num / den                          # CrossEntropyLoss(weight=w), reduction='mean'

    # ---------- focal negative loss: streaming tile (B*C, lt), lane-dense ----------
    x = x_ref[...].astype(jnp.float32)
    t = t_ref[...].astype(jnp.float32)
    col = j * lt + lax.broadcasted_iota(jnp.int32, x.shape, 1)
    omt = 1.0 - t
    omt2 = omt * omt
    contrib = jnp.log1p(-x) * (x * x) * (omt2 * omt2)       # log1p avoids -inf at x == 1
    tile_sum = jnp.sum(jnp.where(col < hw, contrib, 0.0))   # mask any tail padding
    loss_ref[0, 0] = loss_ref[0, 0] - tile_sum              # neg_loss = -sum(...)


def my_cross_entropy_loss(out, target, ind, mask, cat):
    """Forward pass of MyCrossEntropyLoss. Inputs are NCHW, like the torch module."""
    del mask  # unused by the reference forward
    B, C, H, W = out.shape
    K = ind.shape[1]
    HW = H * W
    BC = B * C

    # Lane-dense channel-major views: FREE reshapes of the NCHW tensors (no transpose).
    x2 = out.reshape(BC, HW)
    t2 = target.reshape(BC, HW)

    # --- tiny gather of the B*K positive pixels (B*K*C elements, negligible traffic) ---
    # TODO(synk): could be moved in-kernel via PrefetchScalarGridSpec + pl.Element index
    # maps (one (1,C,1) block per positive); kept in the wrapper since the data volume is
    # tiny next to the streaming pass and it keeps all heavy math inside the kernel.
    out3 = out.reshape(B, C, HW)
    tgt3 = target.reshape(B, C, HW)
    ind_ = ind.astype(jnp.int32)
    cat_ = cat.astype(jnp.int32)
    pos_x = jnp.take_along_axis(out3, ind_[:, None, :], axis=2)              # (B, C, K)
    pos_t = jnp.take_along_axis(tgt3, ind_[:, None, :], axis=2)              # (B, C, K)
    pos_gt = jnp.take_along_axis(pos_t, cat_[:, None, :], axis=1)[:, 0, :]   # (B, K)

    BK = B * K
    BKP = ((BK + 127) // 128) * 128          # pad positives to a multiple of 128 lanes
    px = jnp.full((8, BKP), NEG_FILL, jnp.float32)
    px = px.at[:C, :BK].set(
        jnp.transpose(pos_x, (1, 0, 2)).reshape(C, BK).astype(jnp.float32))
    pgt = jnp.zeros((1, BKP), jnp.float32).at[0, :BK].set(
        pos_gt.reshape(BK).astype(jnp.float32))
    pval = jnp.zeros((1, BKP), jnp.float32).at[0, :BK].set(1.0)

    # Lane tile: multiple of 128 when possible, otherwise a single full-width block.
    lt = min(LANE_TILE, HW) if HW % 128 == 0 else HW
    nt = pl.cdiv(HW, lt)

    kernel = functools.partial(_loss_kernel, hw=HW, lt=lt)
    loss = pl.pallas_call(
        kernel,
        out_shape=jax.ShapeDtypeStruct((1, 1), jnp.float32),
        grid=(nt,),
        in_specs=[
            pl.BlockSpec((BC, lt), lambda j: (0, j)),     # out  (B*C, HW) streamed
            pl.BlockSpec((BC, lt), lambda j: (0, j)),     # tgt  (B*C, HW) streamed
            pl.BlockSpec((8, BKP), lambda j: (0, 0)),     # gathered positive logits (resident)
            pl.BlockSpec((1, BKP), lambda j: (0, 0)),     # gathered positive gt values
            pl.BlockSpec((1, BKP), lambda j: (0, 0)),     # validity mask for lane padding
        ],
        out_specs=pl.BlockSpec(memory_space=pltpu.MemorySpace.SMEM),  # (1,1) scalar accumulator
        compiler_params=pltpu.CompilerParams(
            dimension_semantics=("arbitrary",)),          # reduction axis
    )(x2, t2, px, pgt, pval)
    return loss[0, 0]


def _reference_loss(out, target, ind, mask, cat):
    """Pure-JAX reference mirroring the PyTorch forward exactly (validation only)."""
    del mask
    w = jnp.array([W0, W1, W2], jnp.float32)
    gtp = (1.0 - target) ** 4
    neg = -jnp.sum(jnp.log(1.0 - out) * out ** 2 * gtp)
    B, C, H, W = out.shape
    out_p = jnp.transpose(out, (0, 2, 3, 1)).reshape(B, H * W, C)
    tgt_p = jnp.transpose(target, (0, 2, 3, 1)).reshape(B, H * W, C)
    pos_pred = jnp.take_along_axis(out_p, ind[..., None], axis=1)     # (B, K, C)
    pos_gt_pix = jnp.take_along_axis(tgt_p, ind[..., None], axis=1)   # (B, K, C)
    pos_gt = jnp.take_along_axis(pos_gt_pix, cat[..., None], axis=2)[..., 0]
    y = pos_gt.astype(jnp.int32).reshape(-1)
    x = pos_pred.reshape(-1, C)
    lse = jax.scipy.special.logsumexp(x, axis=1)
    x_y = jnp.take_along_axis(x, y[:, None], axis=1)[:, 0]
    w_y = w[y]
    ce = jnp.sum(w_y * (lse - x_y)) / jnp.sum(w_y)
    return ce + neg


if __name__ == "__main__":
    B, C, H, W, K = 2, 3, 32, 32, 8   # C must be 3 (CE class weights)
    key = jax.random.PRNGKey(0)
    k1, k2, k3, k4 = jax.random.split(key, 4)

    # Heatmap-like predictions in (0, 1) (clamped like CenterNet does pre-loss).
    out = jax.nn.sigmoid(jax.random.normal(k1, (B, C, H, W), jnp.float32))
    out = jnp.clip(out, 1e-4, 1.0 - 1e-4)
    target = jax.random.uniform(k2, (B, C, H, W), jnp.float32, minval=0.0, maxval=0.99)
    ind = jax.random.randint(k3, (B, K), 0, H * W, jnp.int32)
    cat = jax.random.randint(k4, (B, K), 0, C, jnp.int32)
    mask = jnp.ones((B, K), jnp.float32)

    # Put exact 1.0 peaks at half of the gathered (cat, ind) positions so the CE
    # labels are a mix of class 1 (peak) and class 0 (non-peak), like real data.
    b_idx = jnp.broadcast_to(jnp.arange(B)[:, None], (B, K))
    h_idx, w_idx = ind // W, ind % W
    half = K // 2
    target = target.at[b_idx[:, :half], cat[:, :half],
                       h_idx[:, :half], w_idx[:, :half]].set(1.0)

    loss = jax.block_until_ready(my_cross_entropy_loss(out, target, ind, mask, cat))
    ref = _reference_loss(out, target, ind, mask, cat)
    assert bool(jnp.isfinite(loss)), ("non-finite loss", loss)
    assert bool(jnp.allclose(loss, ref, rtol=1e-3, atol=1e-3)), (loss, ref)
    print("KERNEL_OK")
</pallas_src>

<mosaic_0001>
module attributes {stable_mosaic.version = 11 : i64} {
  func.func @_loss_kernel(%arg0: i32, %arg1: memref<6x512xf32, #tpu.memory_space<vmem>>, %arg2: memref<6x512xf32, #tpu.memory_space<vmem>>, %arg3: memref<8x128xf32, #tpu.memory_space<vmem>>, %arg4: memref<1x128xf32, #tpu.memory_space<vmem>>, %arg5: memref<1x128xf32, #tpu.memory_space<vmem>>, %arg6: memref<1x1xf32, #tpu.memory_space<smem>>) attributes {dimension_semantics = [#tpu.dimension_semantics<arbitrary>], iteration_bounds = array<i64: 2>, scalar_prefetch = 0 : i64, scratch_operands = 0 : i64, tpu.core_type = #tpu.core_type<tc>, window_params = [{transform_indices = @transform_0, window_bounds = array<i64: 6, 512>}, {transform_indices = @transform_1, window_bounds = array<i64: 6, 512>}, {pipeline_mode = #tpu.pipeline_mode<synchronous>, transform_indices = @transform_2, window_bounds = array<i64: 8, 128>}, {pipeline_mode = #tpu.pipeline_mode<synchronous>, transform_indices = @transform_3, window_bounds = array<i64: 1, 128>}, {pipeline_mode = #tpu.pipeline_mode<synchronous>, transform_indices = @transform_4, window_bounds = array<i64: 1, 128>}, {transform_indices = @transform_5, window_bounds = array<i64: 1, 1>}]} {
    %c0_i32 = arith.constant 0 : i32
    %0 = arith.cmpi eq, %arg0, %c0_i32 : i32
    %1 = arith.extui %0 : i1 to i32
    %c0_i32_0 = arith.constant 0 : i32
    %2 = arith.cmpi ne, %1, %c0_i32_0 : i32
    scf.if %2 {
      %c0_11 = arith.constant 0 : index
      %c0_12 = arith.constant 0 : index
      %30 = vector.load %arg3[%c0_11, %c0_12] : memref<8x128xf32, #tpu.memory_space<vmem>>, vector<8x128xf32>
      %c0_13 = arith.constant 0 : index
      %c0_14 = arith.constant 0 : index
      %31 = vector.load %arg4[%c0_13, %c0_14] : memref<1x128xf32, #tpu.memory_space<vmem>>, vector<1x128xf32>
      %c0_15 = arith.constant 0 : index
      %c0_16 = arith.constant 0 : index
      %32 = vector.load %arg5[%c0_15, %c0_16] : memref<1x128xf32, #tpu.memory_space<vmem>>, vector<1x128xf32>
      %33 = arith.fptosi %31 : vector<1x128xf32> to vector<1x128xi32>
      %34 = tpu.iota {dimensions = array<i32: 0>} : vector<8x128xi32>
      %cst_17 = arith.constant dense<0xFF800000> : vector<128xf32>
      %35 = vector.multi_reduction <maximumf>, %30, %cst_17 [0] : vector<8x128xf32> to vector<128xf32>
      %36 = vector.shape_cast %35 : vector<128xf32> to vector<1x128xf32>
      %37 = vector.broadcast %36 : vector<1x128xf32> to vector<8x128xf32>
      %38 = arith.subf %30, %37 : vector<8x128xf32>
      %39 = math.exp %38 : vector<8x128xf32>
      %cst_18 = arith.constant dense<0.000000e+00> : vector<128xf32>
      %40 = vector.multi_reduction <add>, %39, %cst_18 [0] : vector<8x128xf32> to vector<128xf32>
      %41 = vector.shape_cast %40 : vector<128xf32> to vector<1x128xf32>
      %42 = math.log %41 : vector<1x128xf32>
      %43 = arith.addf %42, %36 : vector<1x128xf32>
      %44 = vector.broadcast %33 : vector<1x128xi32> to vector<8x128xi32>
      %45 = arith.cmpi eq, %34, %44 : vector<8x128xi32>
      %cst_19 = arith.constant 0.000000e+00 : f32
      %46 = vector.broadcast %cst_19 : f32 to vector<8x128xf32>
      %47 = arith.select %45, %30, %46 : vector<8x128xi1>, vector<8x128xf32>
      %cst_20 = arith.constant dense<0.000000e+00> : vector<128xf32>
      %48 = vector.multi_reduction <add>, %47, %cst_20 [0] : vector<8x128xf32> to vector<128xf32>
      %49 = vector.shape_cast %48 : vector<128xf32> to vector<1x128xf32>
      %c0_i32_21 = arith.constant 0 : i32
      %50 = vector.broadcast %c0_i32_21 : i32 to vector<1x128xi32>
      %51 = arith.cmpi eq, %33, %50 : vector<1x128xi32>
      %c1_i32 = arith.constant 1 : i32
      %52 = vector.broadcast %c1_i32 : i32 to vector<1x128xi32>
      %53 = arith.cmpi eq, %33, %52 : vector<1x128xi32>
      %cst_22 = arith.constant 1.053100e+00 : f32
      %cst_23 = arith.constant 4.331200e+01 : f32
      %54 = vector.broadcast %cst_22 : f32 to vector<1x128xf32>
      %55 = vector.broadcast %cst_23 : f32 to vector<1x128xf32>
      %56 = arith.select %53, %54, %55 : vector<1x128xi1>, vector<1x128xf32>
      %cst_24 = arith.constant 4.932000e-01 : f32
      %57 = vector.broadcast %cst_24 : f32 to vector<1x128xf32>
      %58 = arith.select %51, %57, %56 : vector<1x128xi1>, vector<1x128xf32>
      %59 = arith.mulf %32, %58 : vector<1x128xf32>
      %60 = arith.subf %43, %49 : vector<1x128xf32>
      %61 = arith.mulf %59, %60 : vector<1x128xf32>
      %62 = vector.shape_cast %61 : vector<1x128xf32> to vector<1x1x128xf32>
      %cst_25 = arith.constant dense<0.000000e+00> : vector<1xf32>
      %63 = vector.multi_reduction <add>, %62, %cst_25 [1, 2] : vector<1x1x128xf32> to vector<1xf32>
      %64 = vector.shape_cast %63 : vector<1xf32> to vector<1x1x1xf32>
      %65 = vector.extract %64[0, 0, 0] : f32 from vector<1x1x1xf32>
      %66 = arith.mulf %32, %58 : vector<1x128xf32>
      %67 = vector.shape_cast %66 : vector<1x128xf32> to vector<1x1x128xf32>
      %cst_26 = arith.constant dense<0.000000e+00> : vector<1xf32>
      %68 = vector.multi_reduction <add>, %67, %cst_26 [1, 2] : vector<1x1x128xf32> to vector<1xf32>
      %69 = vector.shape_cast %68 : vector<1xf32> to vector<1x1x1xf32>
      %70 = vector.extract %69[0, 0, 0] : f32 from vector<1x1x1xf32>
      %71 = arith.divf %65, %70 : f32
      %c0_27 = arith.constant 0 : index
      %c0_28 = arith.constant 0 : index
      %72 = memref.load %arg6[%c0_27, %c0_28] : memref<1x1xf32, #tpu.memory_space<smem>>
      memref.store %71, %arg6[%c0_27, %c0_28] : memref<1x1xf32, #tpu.memory_space<smem>>
    } else {
    }
    %c0 = arith.constant 0 : index
    %c0_1 = arith.constant 0 : index
    %3 = vector.load %arg1[%c0, %c0_1] : memref<6x512xf32, #tpu.memory_space<vmem>>, vector<6x512xf32>
    %c0_2 = arith.constant 0 : index
    %c0_3 = arith.constant 0 : index
    %4 = vector.load %arg2[%c0_2, %c0_3] : memref<6x512xf32, #tpu.memory_space<vmem>>, vector<6x512xf32>
    %c512_i32 = arith.constant 512 : i32
    %5 = arith.muli %arg0, %c512_i32 : i32
    %6 = tpu.iota {dimensions = array<i32: 1>} : vector<6x512xi32>
    %7 = vector.broadcast %5 : i32 to vector<6x512xi32>
    %8 = arith.addi %7, %6 : vector<6x512xi32>
    %cst = arith.constant 1.000000e+00 : f32
    %9 = vector.broadcast %cst : f32 to vector<6x512xf32>
    %10 = arith.subf %9, %4 : vector<6x512xf32>
    %11 = arith.mulf %10, %10 : vector<6x512xf32>
    %cst_4 = arith.constant 0.000000e+00 : f32
    %12 = vector.broadcast %cst_4 : f32 to vector<6x512xf32>
    %13 = arith.subf %12, %3 : vector<6x512xf32>
    %14 = math.log1p %13 : vector<6x512xf32>
    %15 = arith.mulf %3, %3 : vector<6x512xf32>
    %16 = arith.mulf %14, %15 : vector<6x512xf32>
    %17 = arith.mulf %11, %11 : vector<6x512xf32>
    %18 = arith.mulf %16, %17 : vector<6x512xf32>
    %c1024_i32 = arith.constant 1024 : i32
    %19 = vector.broadcast %c1024_i32 : i32 to vector<6x512xi32>
    %20 = arith.cmpi slt, %8, %19 : vector<6x512xi32>
    %cst_5 = arith.constant 0.000000e+00 : f32
    %21 = vector.broadcast %cst_5 : f32 to vector<6x512xf32>
    %22 = arith.select %20, %18, %21 : vector<6x512xi1>, vector<6x512xf32>
    %23 = vector.shape_cast %22 : vector<6x512xf32> to vector<1x6x512xf32>
    %cst_6 = arith.constant dense<0.000000e+00> : vector<1xf32>
    %24 = vector.multi_reduction <add>, %23, %cst_6 [1, 2] : vector<1x6x512xf32> to vector<1xf32>
    %25 = vector.shape_cast %24 : vector<1xf32> to vector<1x1x1xf32>
    %26 = vector.extract %25[0, 0, 0] : f32 from vector<1x1x1xf32>
    %c0_7 = arith.constant 0 : index
    %c0_8 = arith.constant 0 : index
    %27 = memref.load %arg6[%c0_7, %c0_8] : memref<1x1xf32, #tpu.memory_space<smem>>
    %28 = arith.subf %27, %26 : f32
    %c0_9 = arith.constant 0 : index
    %c0_10 = arith.constant 0 : index
    %29 = memref.load %arg6[%c0_9, %c0_10] : memref<1x1xf32, #tpu.memory_space<smem>>
    memref.store %28, %arg6[%c0_9, %c0_10] : memref<1x1xf32, #tpu.memory_space<smem>>
    return
  }
  func.func @transform_0(%arg0: i32) -> (i32, i32) {
    %c0_i32 = arith.constant 0 : i32
    %c0_i32_0 = arith.constant 0 : i32
    return %c0_i32, %arg0 : i32, i32
  }
  func.func @transform_1(%arg0: i32) -> (i32, i32) {
    %c0_i32 = arith.constant 0 : i32
    %c0_i32_0 = arith.constant 0 : i32
    return %c0_i32, %arg0 : i32, i32
  }
  func.func @transform_2(%arg0: i32) -> (i32, i32) {
    %c0_i32 = arith.constant 0 : i32
    %c0_i32_0 = arith.constant 0 : i32
    %c0_i32_1 = arith.constant 0 : i32
    return %c0_i32, %c0_i32_0 : i32, i32
  }
  func.func @transform_3(%arg0: i32) -> (i32, i32) {
    %c0_i32 = arith.constant 0 : i32
    %c0_i32_0 = arith.constant 0 : i32
    %c0_i32_1 = arith.constant 0 : i32
    return %c0_i32, %c0_i32_0 : i32, i32
  }
  func.func @transform_4(%arg0: i32) -> (i32, i32) {
    %c0_i32 = arith.constant 0 : i32
    %c0_i32_0 = arith.constant 0 : i32
    %c0_i32_1 = arith.constant 0 : i32
    return %c0_i32, %c0_i32_0 : i32, i32
  }
  func.func @transform_5(%arg0: i32) -> (i32, i32) {
    %c0_i32 = arith.constant 0 : i32
    %c0_i32_0 = arith.constant 0 : i32
    %c0_i32_1 = arith.constant 0 : i32
    return %c0_i32, %c0_i32_0 : i32, i32
  }
}

</mosaic_0001>

<llo_original>
// kernel: tpu_custom_call.1
$region0: #{tpu_custom_call.1}
  #allocation0 [shape = 'u32[]', space=smem, size = 0x4, offset = 0x4, fixed_abs, tag = 'smem constant byte address 0x4 - core index']
  #allocation1 [shape = 'u32[144,128]{1,0:T(1,128)}', space=vmem, size = 0x12000, scoped, tag = 'internal scratch']
  %s0 = inlined_call_operand.hbm [shape: f32[6,1024], index: 0, kind: input, shape index: {}]
  %s1 = inlined_call_operand.hbm [shape: f32[6,1024], index: 1, kind: input, shape index: {}]
  %s2 = inlined_call_operand.hbm [shape: f32[8,128], index: 2, kind: input, shape index: {}]
  %s3 = inlined_call_operand.vmem [shape: f32[1,128], index: 3, kind: input, shape index: {}]
  %s4 = inlined_call_operand.vmem [shape: f32[1,128], index: 4, kind: input, shape index: {}]
  %s5 = inlined_call_operand.hbm [shape: f32[1,1], index: 5, kind: output, shape index: {}]
  %s6 = sld [smem:[#allocation0]]
  $region69: #{tpu_custom_call.1} parent=0
    _
  %s8 = ssub.s32 1, %s6
  %s9 = scalar_select 0, %s8, %s6
  $region1: #{tpu_custom_call.1} parent=0
    #allocation2 [shape = 'u8[32768]{0}', space=vmem, size = 0x8000, scoped, tag = 'input window, operand 0']
    #allocation3 [shape = 's32[2]{0}', space=sflag, size = 0x8, scoped, tag = 'scoped memory for tpu_custom_call.1']
    #allocation4 [shape = 's32[2]{0}', space=sflag, size = 0x8, scoped, tag = 'scoped memory for tpu_custom_call.1']
    #allocation5 [shape = 'u8[32768]{0}', space=vmem, size = 0x8000, scoped, tag = 'input window, operand 1']
    #allocation6 [shape = 's32[2]{0}', space=sflag, size = 0x8, scoped, tag = 'scoped memory for tpu_custom_call.1']
    #allocation7 [shape = 'u8[4096]{0}', space=vmem, size = 0x1000, scoped, tag = 'input window, operand 2, single buffered']
    #allocation8 [shape = 'u8[512]{0}', space=smem, size = 0x200, scoped, tag = 'output window, operand 0, single buffered']
    %10 = vsyncpa [#allocation3], 0
    %s11 = scalar_lea.sflag [#allocation3], 1
    %12 = vsyncpa %s11, 0
    %13 = vsyncpa [#allocation6], 0
    %s14 = scalar_lea.sflag [#allocation6], 1
    %15 = vsyncpa %s14, 0
    %16 = vsyncpa [#allocation4], 0
    loop: start=0, step=1, limit=4
    $region2: #{tpu_custom_call.1} parent=1 // loop_pre_header
      _
    $region3: #{tpu_custom_call.1} parent=1 // loop_header
      %s18 = sphi 0, %s22
      %p19 = scmp.ge.s32.totalorder %s18, 4
      %s28 = sphi 0, %s30
      %s31 = sphi 0, %s28
      %s32 = sphi 0, %s31
      %s48 = sphi 0, %s32
      %s54 = sphi 0, %s56
      %s57 = sphi 0, %s54
      %s58 = sphi 0, %s57
      %s74 = sphi 0, %s58
      %s78 = sphi 0, %s78
      %s80 = sphi 0, %s78
      %s81 = sphi 0, %s80
      %s95 = sphi 0, %s81
      %s99 = sphi 0, %s99
      %s101 = sphi 0, %s99
      %s102 = sphi 0, %s101
      %s116 = sphi 0, %s102
      %s120 = sphi 0, %s120
      %s122 = sphi 0, %s120
      %s123 = sphi 0, %s122
      %s137 = sphi 0, %s123
      %s141 = sphi 0, %s141
      %s143 = sphi 0, %s141
      %s144 = sphi 0, %s143
      %s158 = sphi 0, %s144
    $region4: #{tpu_custom_call.1} parent=1 // loop_header_branch
      %21 = sbr.rel (%p19) target = $region8
    $region5: #{tpu_custom_call.1} parent=1 // loop_body
      %s23 = ssub.s32 %s18, 1
      %s24 = ssub.s32 %s18, 2
      %s25 = sadd.s32 %s18, 1
      %s26 = ssub.s32 %s18, %s25
      %p27 = scmp.eq.s32.totalorder %s26, 0
      %s29 = sadd.s32 %s28, 1
      %s30 = scalar_select %p27, %s28, %s29
      %p33 = pneg %p27
      %p34 = scmp.eq.s32.totalorder %s18, 1
      %p35 = por %p33, %p34
      %p36 = scmp.ne.s32.totalorder %s28, %s31
      %p37 = scmp.eq.s32.totalorder %s18, 0
      %p38 = por %p36, %p37
      %p39 = scmp.ne.s32.totalorder %s28, %s31
      %p40 = scmp.eq.s32.totalorder %s23, 1
      %p41 = por %p39, %p40
      %p42 = scmp.ne.s32.totalorder %s31, %s32
      %p43 = scmp.eq.s32.totalorder %s23, 0
      %p44 = por %p42, %p43
      %p45 = scmp.ne.s32.totalorder %s31, %s32
      %p46 = scmp.eq.s32.totalorder %s24, 1
      %p47 = por %p45, %p46
      %p49 = scmp.ne.s32.totalorder %s32, %s48
      %p50 = scmp.eq.s32.totalorder %s24, 0
      %p51 = por %p49, %p50
      %s52 = ssub.s32 %s18, %s25
      %p53 = scmp.eq.s32.totalorder %s52, 0
      %s55 = sadd.s32 %s54, 1
      %s56 = scalar_select %p53, %s54, %s55
      %p59 = pneg %p53
      %p60 = scmp.eq.s32.totalorder %s18, 1
      %p61 = por %p59, %p60
      %p62 = scmp.ne.s32.totalorder %s54, %s57
      %p63 = scmp.eq.s32.totalorder %s18, 0
      %p64 = por %p62, %p63
      %p65 = scmp.ne.s32.totalorder %s54, %s57
      %p66 = scmp.eq.s32.totalorder %s23, 1
      %p67 = por %p65, %p66
      %p68 = scmp.ne.s32.totalorder %s57, %s58
      %p69 = scmp.eq.s32.totalorder %s23, 0
      %p70 = por %p68, %p69
      %p71 = scmp.ne.s32.totalorder %s57, %s58
      %p72 = scmp.eq.s32.totalorder %s24, 1
      %p73 = por %p71, %p72
      %p75 = scmp.ne.s32.totalorder %s58, %s74
      %p76 = scmp.eq.s32.totalorder %s24, 0
      %p77 = por %p75, %p76
      %s79 = sadd.s32 %s78, 1
      %p82 = scmp.eq.s32.totalorder %s18, 1
      %p83 = scmp.ne.s32.totalorder %s78, %s80
      %p84 = scmp.eq.s32.totalorder %s18, 0
      %p85 = por %p83, %p84
      %p86 = scmp.ne.s32.totalorder %s78, %s80
      %p87 = scmp.eq.s32.totalorder %s23, 1
      %p88 = por %p86, %p87
      %p89 = scmp.ne.s32.totalorder %s80, %s81
      %p90 = scmp.eq.s32.totalorder %s23, 0
      %p91 = por %p89, %p90
      %p92 = scmp.ne.s32.totalorder %s80, %s81
      %p93 = scmp.eq.s32.totalorder %s24, 1
      %p94 = por %p92, %p93
      %p96 = scmp.ne.s32.totalorder %s81, %s95
      %p97 = scmp.eq.s32.totalorder %s24, 0
      %p98 = por %p96, %p97
      %s100 = sadd.s32 %s99, 1
      %p103 = scmp.eq.s32.totalorder %s18, 1
      %p104 = scmp.ne.s32.totalorder %s99, %s101
      %p105 = scmp.eq.s32.totalorder %s18, 0
      %p106 = por %p104, %p105
      %p107 = scmp.ne.s32.totalorder %s99, %s101
      %p108 = scmp.eq.s32.totalorder %s23, 1
      %p109 = por %p107, %p108
      %p110 = scmp.ne.s32.totalorder %s101, %s102
      %p111 = scmp.eq.s32.totalorder %s23, 0
      %p112 = por %p110, %p111
      %p113 = scmp.ne.s32.totalorder %s101, %s102
      %p114 = scmp.eq.s32.totalorder %s24, 1
      %p115 = por %p113, %p114
      %p117 = scmp.ne.s32.totalorder %s102, %s116
      %p118 = scmp.eq.s32.totalorder %s24, 0
      %p119 = por %p117, %p118
      %s121 = sadd.s32 %s120, 1
      %p124 = scmp.eq.s32.totalorder %s18, 1
      %p125 = scmp.ne.s32.totalorder %s120, %s122
      %p126 = scmp.eq.s32.totalorder %s18, 0
      %p127 = por %p125, %p126
      %p128 = scmp.ne.s32.totalorder %s120, %s122
      %p129 = scmp.eq.s32.totalorder %s23, 1
      %p130 = por %p128, %p129
      %p131 = scmp.ne.s32.totalorder %s122, %s123
      %p132 = scmp.eq.s32.totalorder %s23, 0
      %p133 = por %p131, %p132
      %p134 = scmp.ne.s32.totalorder %s122, %s123
      %p135 = scmp.eq.s32.totalorder %s24, 1
      %p136 = por %p134, %p135
      %p138 = scmp.ne.s32.totalorder %s123, %s137
      %p139 = scmp.eq.s32.totalorder %s24, 0
      %p140 = por %p138, %p139
      %s142 = sadd.s32 %s141, 1
      %p145 = scmp.eq.s32.totalorder %s18, 1
      %p146 = scmp.ne.s32.totalorder %s141, %s143
      %p147 = scmp.eq.s32.totalorder %s18, 0
      %p148 = por %p146, %p147
      %p149 = scmp.ne.s32.totalorder %s141, %s143
      %p150 = scmp.eq.s32.totalorder %s23, 1
      %p151 = por %p149, %p150
      %p152 = scmp.ne.s32.totalorder %s143, %s144
      %p153 = scmp.eq.s32.totalorder %s23, 0
      %p154 = por %p152, %p153
      %p155 = scmp.ne.s32.totalorder %s143, %s144
      %p156 = scmp.eq.s32.totalorder %s24, 1
      %p157 = por %p155, %p156
      %p159 = scmp.ne.s32.totalorder %s144, %s158
      %p160 = scmp.eq.s32.totalorder %s24, 0
      %p161 = por %p159, %p160
      %p162 = scmp.le.s32.totalorder 1, %s18
      %p163 = scmp.lt.s32.totalorder %s18, 3
      %p164 = pnand %p162, %p163
      %p165 = pneg %p164
      // Predicated region
      $region9: #{tpu_custom_call.1} parent=5 // pred_check
        _
      $region10: #{tpu_custom_call.1} parent=5 // pred_check_branch
        %167 = sbr.rel (%p164) target = $region12
      $region11: #{tpu_custom_call.1} parent=5 // pred_region
        %s168 = ssub.s32 %s18, 1
        // Predicated region
        $region13: #{tpu_custom_call.1} parent=11 // pred_check
          %p169 = pneg %p91
        $region14: #{tpu_custom_call.1} parent=11 // pred_check_branch
          %171 = sbr.rel (%p169) target = $region16
        $region15: #{tpu_custom_call.1} parent=11 // pred_region
          %s173 = ssub.s32 128, 128
          %174 = vsyncadd [#allocation6], %s173
          %s176 = sshll.u32 [#allocation7], 4
          %s177 = int_to_ptr.vmem [resolvable:$true] %s176
          %179 = dma.hbm_to_vmem [thread:$0]  %s2, 128, %s177, [#allocation6]
        $region16: #{tpu_custom_call.1} parent=11 // pred_fallthru
          _
        // Predicated region
        $region17: #{tpu_custom_call.1} parent=11 // pred_check
          %p180 = pneg %p112
        $region18: #{tpu_custom_call.1} parent=11 // pred_check_branch
          %182 = sbr.rel (%p180) target = $region20
        $region19: #{tpu_custom_call.1} parent=11 // pred_region
          _
        $region20: #{tpu_custom_call.1} parent=11 // pred_fallthru
          _
        // Predicated region
        $region21: #{tpu_custom_call.1} parent=11 // pred_check
          %p183 = pneg %p133
        $region22: #{tpu_custom_call.1} parent=11 // pred_check_branch
          %185 = sbr.rel (%p183) target = $region24
        $region23: #{tpu_custom_call.1} parent=11 // pred_region
          _
        $region24: #{tpu_custom_call.1} parent=11 // pred_fallthru
          _
      $region12: #{tpu_custom_call.1} parent=5 // pred_fallthru
        _
      %p186 = scmp.lt.s32.totalorder %s18, 2
      // Predicated region
      $region25: #{tpu_custom_call.1} parent=5 // pred_check
        %p187 = pneg %p186
      $region26: #{tpu_custom_call.1} parent=5 // pred_check_branch
        %189 = sbr.rel (%p187) target = $region28
      $region27: #{tpu_custom_call.1} parent=5 // pred_region
        // Predicated region
        $region29: #{tpu_custom_call.1} parent=27 // pred_check
          %p190 = pneg %p38
        $region30: #{tpu_custom_call.1} parent=27 // pred_check_branch
          %192 = sbr.rel (%p190) target = $region32
        $region31: #{tpu_custom_call.1} parent=27 // pred_region
          %s193 = sand.u32 %s28, 1
          %s194 = scalar_lea.sflag [#allocation3], %s193
          %s195 = sand.u32 %s28, 1
          %s196 = smul.addr %s195, 32
          %s197 = scalar_lea.vmem [#allocation2], %s196
          %s198 = smul.u32 4, %s18
          %s200 = ssub.s32 512, 512
          %201 = vsyncadd %s194, %s200
          %s202 = smul.addr %s198, 128
          %s203 = scalar_lea.hbm %s0, %s202
          %s205 = sshll.u32 %s197, 4
          %s206 = int_to_ptr.vmem [resolvable:$true] %s205
          %208 = dma.hbm_to_vmem [thread:$0]  %s203, 512, %s206, %s194
        $region32: #{tpu_custom_call.1} parent=27 // pred_fallthru
          _
        // Predicated region
        $region33: #{tpu_custom_call.1} parent=27 // pred_check
          %p209 = pneg %p64
        $region34: #{tpu_custom_call.1} parent=27 // pred_check_branch
          %211 = sbr.rel (%p209) target = $region36
        $region35: #{tpu_custom_call.1} parent=27 // pred_region
          %s212 = sand.u32 %s18, 1
          %s213 = scalar_lea.sflag [#allocation6], %s212
          %s214 = sand.u32 %s54, 1
          %s215 = smul.addr %s214, 32
          %s216 = scalar_lea.vmem [#allocation5], %s215
          %s217 = smul.u32 4, %s18
          %s219 = ssub.s32 512, 512
          %220 = vsyncadd %s213, %s219
          %s221 = smul.addr %s217, 128
          %s222 = scalar_lea.hbm %s1, %s221
          %s224 = sshll.u32 %s216, 4
          %s225 = int_to_ptr.vmem [resolvable:$true] %s224
          %227 = dma.hbm_to_vmem [thread:$0]  %s222, 512, %s225, %s213
        $region36: #{tpu_custom_call.1} parent=27 // pred_fallthru
          _
      $region28: #{tpu_custom_call.1} parent=5 // pred_fallthru
        _
      %p228 = scmp.le.s32.totalorder 1, %s18
      %p229 = scmp.lt.s32.totalorder %s18, 3
      %p230 = pnand %p228, %p229
      %p231 = pneg %p230
      // Predicated region
      $region37: #{tpu_custom_call.1} parent=5 // pred_check
        _
      $region38: #{tpu_custom_call.1} parent=5 // pred_check_branch
        %233 = sbr.rel (%p230) target = $region40
      $region39: #{tpu_custom_call.1} parent=5 // pred_region
        %s234 = ssub.s32 %s18, 1
        %s235 = sand.u32 %s31, 1
        %s236 = scalar_lea.sflag [#allocation3], %s235
        %s237 = sand.u32 %s31, 1
        %s238 = smul.addr %s237, 32
        %s239 = scalar_lea.vmem [#allocation2], %s238
        // Predicated region
        $region41: #{tpu_custom_call.1} parent=39 // pred_check
          %p240 = pneg %p44
        $region42: #{tpu_custom_call.1} parent=39 // pred_check_branch
          %242 = sbr.rel (%p240) target = $region44
        $region43: #{tpu_custom_call.1} parent=39 // pred_region
          %243 = dma.done %s236, 512
        $region44: #{tpu_custom_call.1} parent=39 // pred_fallthru
          _
        %s244 = sand.u32 %s23, 1
        %s245 = scalar_lea.sflag [#allocation6], %s244
        %s246 = sand.u32 %s57, 1
        %s247 = smul.addr %s246, 32
        %s248 = scalar_lea.vmem [#allocation5], %s247
        // Predicated region
        $region45: #{tpu_custom_call.1} parent=39 // pred_check
          %p249 = pneg %p70
        $region46: #{tpu_custom_call.1} parent=39 // pred_check_branch
          %251 = sbr.rel (%p249) target = $region48
        $region47: #{tpu_custom_call.1} parent=39 // pred_region
          %252 = dma.done %s245, 512
        $region48: #{tpu_custom_call.1} parent=39 // pred_fallthru
          _
        // Predicated region
        $region49: #{tpu_custom_call.1} parent=39 // pred_check
          %p253 = pneg %p91
        $region50: #{tpu_custom_call.1} parent=39 // pred_check_branch
          %255 = sbr.rel (%p253) target = $region52
        $region51: #{tpu_custom_call.1} parent=39 // pred_region
          %256 = dma.done [#allocation6], 128
        $region52: #{tpu_custom_call.1} parent=39 // pred_fallthru
          _
        %s257 = sand.u32 %s31, 1
        %s258 = scalar_lea.sflag [#allocation3], %s257
        %s259 = sand.u32 %s31, 1
        %s260 = smul.addr %s259, 32
        %s261 = scalar_lea.vmem [#allocation2], %s260
        %p262 = pneg %p44
        %p263 = pneg %p41
        %s264 = sand.u32 %s23, 1
        %s265 = scalar_lea.sflag [#allocation6], %s264
        %s266 = sand.u32 %s57, 1
        %s267 = smul.addr %s266, 32
        %s268 = scalar_lea.vmem [#allocation5], %s267
        %p269 = pneg %p70
        %p270 = pneg %p67
        %p271 = pneg %p91
        %p272 = pneg %p88
        %p273 = pneg %p112
        %p274 = pneg %p109
        %p275 = pneg %p133
        %p276 = pneg %p130
        %p277 = pneg %p154
        %p278 = pneg %p151
        %s279 = smul.u32 4, %s23
        %s280 = smul.u32 4, %s23
        %p281 = scmp.eq.s32.totalorder %s23, 0
        // Predicated region
        $region53: #{tpu_custom_call.1} parent=39 // pred_check
          %p282 = pneg %p281
        $region54: #{tpu_custom_call.1} parent=39 // pred_check_branch
          %284 = sbr.rel (%p282) target = $region56
        $region55: #{tpu_custom_call.1} parent=39 // pred_region
          %v285 = vld [vmem:[#allocation7] sm:$0xff]
          %v286 = vld [vmem:[%s3] sm:$0x1]
          %v287 = vld [vmem:[%s4] sm:$0x1]
          %v288 = vcvt.f32.s32.to.zero.pseudo %v286
          %v289 = vlaneseq
          %v290 = vshrl.u32 %v289, 7
          %v291 = vrot.slane %v285, 4
          %v292 = vmax.f32 %v285, %v291
          %v293 = vrot.slane %v292, 2
          %v294 = vmax.f32 %v292, %v293
          %v295 = vrot.slane %v294, 1
          %v296 = vmax.f32 %v294, %v295
          %v297 = vsub.f32 %v285, %v296
          %v298 = vmul.f32 %v297, 1.442695
          %v299 = vpow.pop %v298
          %v300 = vrot.slane %v299, 4
          %v301 = vadd.f32 %v299, %v300
          %v302 = vrot.slane %v301, 2
          %v303 = vadd.f32 %v301, %v302
          %v304 = vrot.slane %v303, 1
          %v305 = vadd.f32 %v303, %v304
          %v306 = vlog2.pop %v305
          %v307 = vmul.f32 %v306, 0.6931472
          %v308 = vadd.f32 %v307, %v296
          %v309 = vlaneseq
          %v310 = vshrl.u32 %v309, 7
          %v311 = vsub.s32 0, %v310
          %v312 = vrot.slane %v288, %v311
          %vm313 = vcmp.eq.s32.totalorder %v290, %v312
          %v314 = vsel %vm313, %v285, 0.0
          %v315 = vrot.slane %v314, 4
          %v316 = vadd.f32 %v314, %v315
          %v317 = vrot.slane %v316, 2
          %v318 = vadd.f32 %v316, %v317
          %v319 = vrot.slane %v318, 1
          %v320 = vadd.f32 %v318, %v319
          %vm321 = vcmp.eq.s32.totalorder %v288, 0
          %vm322 = vcmp.eq.s32.totalorder %v288, 1
          %v323 = vsel %vm322, 1.0531, 43.312
          %v324 = vsel %vm321, 0.4932, %v323
          %v325 = vmul.f32 %v287, %v324
          %v326 = vsub.f32 %v308, %v320
          %v327 = vmul.f32 %v325, %v326
          %vm328 = vcmask 1040384
          %v329 = vsel %vm328, %v327, 0.0
          %330 = vadd.xlane.f32.xlu0 %v329
          %v331 = vpop.xlane.xlu0 %330
          %v332 = vrot.slane %v331, 4
          %v333 = vadd.f32 %v331, %v332
          %v334 = vrot.slane %v333, 2
          %v335 = vadd.f32 %v333, %v334
          %v336 = vrot.slane %v335, 1
          %v337 = vadd.f32 %v335, %v336
          %s338 = vtos %v337
          %v339 = vsel %vm328, %v325, 0.0
          %340 = vadd.xlane.f32.xlu0 %v339
          %v341 = vpop.xlane.xlu0 %340
          %v342 = vrot.slane %v341, 4
          %v343 = vadd.f32 %v341, %v342
          %v344 = vrot.slane %v343, 2
          %v345 = vadd.f32 %v343, %v344
          %v346 = vrot.slane %v345, 1
          %v347 = vadd.f32 %v345, %v346
          %s348 = vtos %v347
          %v349 = vstv %s348
          %v350 = vrcp.pop %v349
          %s351 = vtos %v350
          %s352 = smul.f32 %s338, %s351
          %s353 = scalar_lea.smem [#allocation8], 0
          %354 = sst [smem:[%s353]] %s352
        $region56: #{tpu_custom_call.1} parent=39 // pred_fallthru
          _
        %v355 = vld [vmem:[%s239] sm:$0x3f]
        %v356 = vld [vmem:[%s239 + $0x8] sm:$0x3f]
        %v357 = vld [vmem:[%s239 + $0x10] sm:$0x3f]
        %v358 = vld [vmem:[%s239 + $0x18] sm:$0x3f]
        %v359 = vld [vmem:[%s248] sm:$0x3f]
        %v360 = vld [vmem:[%s248 + $0x8] sm:$0x3f]
        %v361 = vld [vmem:[%s248 + $0x10] sm:$0x3f]
        %v362 = vld [vmem:[%s248 + $0x18] sm:$0x3f]
        %s363 = smul.u32 %s23, 512
        %v364 = vlaneseq
        %v365 = vand.u32 %v364, 127
        %v366 = vadd.s32 %v365, 128
        %v367 = vadd.s32 %v365, 256
        %v368 = vadd.s32 %v365, 384
        %v369 = vstv %s363
        %v370 = vadd.s32 %v369, %v365
        %v371 = vadd.s32 %v369, %v366
        %v372 = vadd.s32 %v369, %v367
        %v373 = vadd.s32 %v369, %v368
        %v374 = vsub.f32 1.0, %v359
        %v375 = vsub.f32 1.0, %v360
        %v376 = vsub.f32 1.0, %v361
        %v377 = vsub.f32 1.0, %v362
        %v378 = vmul.f32 %v374, %v374
        %v379 = vmul.f32 %v375, %v375
        %v380 = vmul.f32 %v376, %v376
        %v381 = vmul.f32 %v377, %v377
        %v382 = vsub.f32 0.0, %v355
        %v383 = vsub.f32 0.0, %v356
        %v384 = vsub.f32 0.0, %v357
        %v385 = vsub.f32 0.0, %v358
        %v386 = vadd.f32 %v382, 1.0
        %v387 = vlog2.pop %v386
        %v388 = vmul.f32 %v387, 0.6931472
        %v389 = vmul.f32 -0.5, %v382
        %v390 = vadd.f32 %v389, 1.0
        %v391 = vmul.f32 %v390, %v382
        %v392 = vand.u32 2147483647, %v382
        %vm393 = vcmp.lt.f32.partialorder %v392, 0.0004427343
        %v394 = vsel %vm393, %v391, %v388
        %v395 = vadd.f32 %v383, 1.0
        %v396 = vlog2.pop %v395
        %v397 = vmul.f32 %v396, 0.6931472
        %v398 = vmul.f32 -0.5, %v383
        %v399 = vadd.f32 %v398, 1.0
        %v400 = vmul.f32 %v399, %v383
        %v401 = vand.u32 2147483647, %v383
        %vm402 = vcmp.lt.f32.partialorder %v401, 0.0004427343
        %v403 = vsel %vm402, %v400, %v397
        %v404 = vadd.f32 %v384, 1.0
        %v405 = vlog2.pop %v404
        %v406 = vmul.f32 %v405, 0.6931472
        %v407 = vmul.f32 -0.5, %v384
        %v408 = vadd.f32 %v407, 1.0
        %v409 = vmul.f32 %v408, %v384
        %v410 = vand.u32 2147483647, %v384
        %vm411 = vcmp.lt.f32.partialorder %v410, 0.0004427343
        %v412 = vsel %vm411, %v409, %v406
        %v413 = vadd.f32 %v385, 1.0
        %v414 = vlog2.pop %v413
        %v415 = vmul.f32 %v414, 0.6931472
        %v416 = vmul.f32 -0.5, %v385
        %v417 = vadd.f32 %v416, 1.0
        %v418 = vmul.f32 %v417, %v385
        %v419 = vand.u32 2147483647, %v385
        %vm420 = vcmp.lt.f32.partialorder %v419, 0.0004427343
        %v421 = vsel %vm420, %v418, %v415
        %v422 = vmul.f32 %v355, %v355
        %v423 = vmul.f32 %v356, %v356
        %v424 = vmul.f32 %v357, %v357
        %v425 = vmul.f32 %v358, %v358
        %v426 = vmul.f32 %v394, %v422
        %v427 = vmul.f32 %v403, %v423
        %v428 = vmul.f32 %v412, %v424
        %v429 = vmul.f32 %v421, %v425
        %v430 = vmul.f32 %v378, %v378
        %v431 = vmul.f32 %v379, %v379
        %v432 = vmul.f32 %v380, %v380
        %v433 = vmul.f32 %v381, %v381
        %v434 = vmul.f32 %v426, %v430
        %v435 = vmul.f32 %v427, %v431
        %v436 = vmul.f32 %v428, %v432
        %v437 = vmul.f32 %v429, %v433
        %vm438 = vcmp.lt.s32.totalorder %v370, 1024
        %vm439 = vcmp.lt.s32.totalorder %v371, 1024
        %vm440 = vcmp.lt.s32.totalorder %v372, 1024
        %vm441 = vcmp.lt.s32.totalorder %v373, 1024
        %v442 = vsel %vm438, %v434, 0.0
        %v443 = vsel %vm439, %v435, 0.0
        %v444 = vsel %vm440, %v436, 0.0
        %v445 = vsel %vm441, %v437, 0.0
        %vm446 = vcmask 1045504
        %v447 = vsel %vm446, %v442, 0.0
        %v448 = vsel %vm446, %v443, 0.0
        %v449 = vadd.f32 %v447, %v448
        %v450 = vsel %vm446, %v444, 0.0
        %v451 = vadd.f32 %v449, %v450
        %v452 = vsel %vm446, %v445, 0.0
        %v453 = vadd.f32 %v451, %v452
        %454 = vadd.xlane.f32.xlu0 %v453
        %v455 = vpop.xlane.xlu0 %454
        %v456 = vrot.slane %v455, 4
        %v457 = vadd.f32 %v455, %v456
        %v458 = vrot.slane %v457, 2
        %v459 = vadd.f32 %v457, %v458
        %v460 = vrot.slane %v459, 1
        %v461 = vadd.f32 %v459, %v460
        %s462 = vtos %v461
        %s463 = sld [smem:[#allocation8]]
        %s464 = ssub.f32 %s463, %s462
        %s465 = scalar_lea.smem [#allocation8], 0
        %466 = sst [smem:[%s465]] %s464
        // Predicated region
        $region57: #{tpu_custom_call.1} parent=39 // pred_check
          %p467 = pneg %p151
        $region58: #{tpu_custom_call.1} parent=39 // pred_check_branch
          %469 = sbr.rel (%p467) target = $region60
        $region59: #{tpu_custom_call.1} parent=39 // pred_region
          %s471 = ssub.s32 16, 16
          %472 = vsyncadd [#allocation4], %s471
          %475 = dma.smem_to_hbm [#allocation8], 16, %s5, [#allocation4]
        $region60: #{tpu_custom_call.1} parent=39 // pred_fallthru
          _
        // Predicated region
        $region61: #{tpu_custom_call.1} parent=39 // pred_check
          %p476 = pneg %p151
        $region62: #{tpu_custom_call.1} parent=39 // pred_check_branch
          %478 = sbr.rel (%p476) target = $region64
        $region63: #{tpu_custom_call.1} parent=39 // pred_region
          %479 = dma.done [#allocation4], 16
        $region64: #{tpu_custom_call.1} parent=39 // pred_fallthru
          _
        %480 = sfence
      $region40: #{tpu_custom_call.1} parent=5 // pred_fallthru
        _
      %p481 = scmp.le.s32.totalorder 2, %s18
      // Predicated region
      $region65: #{tpu_custom_call.1} parent=5 // pred_check
        %p482 = pneg %p481
      $region66: #{tpu_custom_call.1} parent=5 // pred_check_branch
        %484 = sbr.rel (%p482) target = $region68
      $region67: #{tpu_custom_call.1} parent=5 // pred_region
        %s485 = ssub.s32 %s18, 2
      $region68: #{tpu_custom_call.1} parent=5 // pred_fallthru
        _
    $region6: #{tpu_custom_call.1} parent=1 // loop_footer
      %s22 = sadd.s32 1, %s18
    $region7: #{tpu_custom_call.1} parent=1 // loop_footer_branch
      %17 = sbr.rel target = $region3
    $region8: #{tpu_custom_call.1} parent=1 // loop_exit
      _
    %486 = vsyncpa [#allocation3], 1
    %s487 = scalar_lea.sflag [#allocation3], 1
    %488 = vsyncpa %s487, 1
    %489 = vsyncpa [#allocation6], 1
    %s490 = scalar_lea.sflag [#allocation6], 1
    %491 = vsyncpa %s490, 1
    %492 = vsyncpa [#allocation4], 1
    %s493 = scalar_lea.sflag [#allocation4], 1
    %494 = vsyncpa %s493, 1

</llo_original>
